<compile_context>
chip_gen: v7x
topology: tpu7x:2x2x1
jax: 0.10.0
libtpu: 0.0.40
codegen_flags: <defaults>
</compile_context>

<pallas_src>
import functools

import jax
import jax.numpy as jnp
from jax.experimental import pallas as pl
from jax.experimental.pallas import tpu as pltpu


# (out_channels, kernel, stride) — standard Nature-DQN encoder stack.
_DQN_CONV_CFG = ((32, 8, 4), (64, 4, 2), (64, 3, 1))

_VMEM_SPEC = functools.partial(pl.BlockSpec, memory_space=pltpu.MemorySpace.VMEM)


# ------------------------------ Pallas kernels -------------------------------
def _conv_mm_kernel(p_ref, w_ref, b_ref, o_ref):
    """Fused (im2col-)matmul + bias + ReLU for one conv layer."""
    y = jnp.dot(p_ref[...], w_ref[...],
                preferred_element_type=jnp.float32) + b_ref[...]
    o_ref[...] = jnp.maximum(y, 0.0)


def _trunk_ensemble_kernel(enc_ref, w1_ref, b1_ref, w2_ref, b2_ref, out_ref,
                           *, num_comps, batch, split_hidden):
    """All ensemble trunks in one kernel; the h/next_h concat is folded into a
    split first-layer matmul (h @ W1[:F] + next_h @ W1[F:])."""
    feat = enc_ref.shape[1]
    x = enc_ref[...]                      # [2B, F]  rows 0:B = h, B:2B = next_h
    h = x[:batch]
    nh = x[batch:]
    n = batch // num_comps if split_hidden else batch
    for e in range(num_comps):            # static unroll; num_comps is small
        if split_hidden:
            he, nhe = h[e * n:(e + 1) * n], nh[e * n:(e + 1) * n]
        else:
            he, nhe = h, nh
        w1 = w1_ref[e]                    # [2F, D]
        z = (jnp.dot(he, w1[:feat], preferred_element_type=jnp.float32)
             + jnp.dot(nhe, w1[feat:], preferred_element_type=jnp.float32)
             + b1_ref[e])
        z = jnp.maximum(z, 0.0)
        out_ref[e] = (jnp.dot(z, w2_ref[e], preferred_element_type=jnp.float32)
                      + b2_ref[e])


# ------------------------------- Wrappers -------------------------------------
def _im2col(x, k, stride):
    """x: [N, H, W, C] -> ([N*OH*OW, k*k*C], (N, OH, OW)); feature order (kh, kw, c)."""
    N, H, W, C = x.shape
    OH = (H - k) // stride + 1
    OW = (W - k) // stride + 1
    cols = []
    for i in range(k):
        for j in range(k):
            cols.append(x[:, i:i + (OH - 1) * stride + 1:stride,
                             j:j + (OW - 1) * stride + 1:stride, :])
    patches = jnp.concatenate(cols, axis=-1)          # [N, OH, OW, k*k*C]
    return patches.reshape(N * OH * OW, k * k * C), (N, OH, OW)


def _conv_layer(patches, w, b):
    M = patches.shape[0]
    cout = w.shape[1]
    return pl.pallas_call(
        _conv_mm_kernel,
        out_shape=jax.ShapeDtypeStruct((M, cout), jnp.float32),
        in_specs=[_VMEM_SPEC()] * 3,
        out_specs=_VMEM_SPEC(),
    )(patches, w, b)


def dqn_encoder_apply(enc_params, x_nchw):
    """DqnEncoder forward: 3x (conv + ReLU) then flatten (NCHW flatten order)."""
    x = jnp.transpose(x_nchw, (0, 2, 3, 1)).astype(jnp.float32)   # -> NHWC
    for (w, b), (cout, k, s) in zip(enc_params, _DQN_CONV_CFG):
        patches, (N, OH, OW) = _im2col(x, k, s)
        y = _conv_layer(patches, w, b)                # fused matmul+bias+ReLU
        x = y.reshape(N, OH, OW, cout)
    x = jnp.transpose(x, (0, 3, 1, 2))                # match torch NCHW flatten
    return x.reshape(x.shape[0], -1)


def dqn_cnn_ss_inv_predictor_ensem_forward(params, obs, next_obs,
                                           detach_encoder=False,
                                           split_hidden=False):
    del detach_encoder   # autograd-only flag; no effect on forward values
    B = obs.shape[0]
    num_comps = params["num_comps"]
    if split_hidden:
        assert B % num_comps == 0
    # Encoder runs once on [obs; next_obs] stacked along the batch axis.
    stacked = jnp.concatenate([obs, next_obs], axis=0)
    enc = dqn_encoder_apply(params["encoder"], stacked)            # [2B, F]

    w1, b1, w2, b2 = params["trunks"]
    n = B // num_comps if split_hidden else B
    A = w2.shape[-1]
    kernel = functools.partial(_trunk_ensemble_kernel, num_comps=num_comps,
                               batch=B, split_hidden=split_hidden)
    out = pl.pallas_call(
        kernel,
        out_shape=jax.ShapeDtypeStruct((num_comps, n, A), jnp.float32),
        in_specs=[_VMEM_SPEC()] * 5,
        out_specs=_VMEM_SPEC(),
    )(enc, w1, b1, w2, b2)
    return out.reshape(num_comps * n, A)               # == torch.cat(..., dim=0)


# --------------------------- Parameter construction ---------------------------
def _linear_init(key, fan_in, fan_out):
    kw, kb = jax.random.split(key)
    bound = 1.0 / jnp.sqrt(jnp.float32(fan_in))
    w = jax.random.uniform(kw, (fan_in, fan_out), jnp.float32, -bound, bound)
    b = jax.random.uniform(kb, (1, fan_out), jnp.float32, -bound, bound)
    return w, b


def make_params(key, obs_shape, action_shape, feature_dim, num_comps):
    C, H, W = obs_shape
    keys = jax.random.split(key, 3 + 2 * num_comps)
    enc_params = []
    cin, h, w = C, H, W
    for li, (cout, k, s) in enumerate(_DQN_CONV_CFG):
        wmat, b = _linear_init(keys[li], k * k * cin, cout)   # [k*k*cin, cout]
        enc_params.append((wmat, b))
        cin, h, w = cout, (h - k) // s + 1, (w - k) // s + 1
    flatten_dim = cin * h * w
    w1s, b1s, w2s, b2s = [], [], [], []
    for e in range(num_comps):
        w1, b1 = _linear_init(keys[3 + 2 * e], 2 * flatten_dim, feature_dim)
        w2, b2 = _linear_init(keys[4 + 2 * e], feature_dim, action_shape)
        w1s.append(w1); b1s.append(b1); w2s.append(w2); b2s.append(b2)
    trunks = (jnp.stack(w1s), jnp.stack(b1s), jnp.stack(w2s), jnp.stack(b2s))
    return {"encoder": enc_params, "trunks": trunks, "num_comps": num_comps,
            "flatten_dim": flatten_dim}


# ---------------------------- Pure-JAX reference ------------------------------
def _encoder_ref(enc_params, x_nchw):
    x = jnp.transpose(x_nchw, (0, 2, 3, 1)).astype(jnp.float32)
    cin = x.shape[-1]
    for (wflat, b), (cout, k, s) in zip(enc_params, _DQN_CONV_CFG):
        w = wflat.reshape(k, k, cin, cout)
        x = jax.lax.conv_general_dilated(
            x, w, window_strides=(s, s), padding="VALID",
            dimension_numbers=("NHWC", "HWIO", "NHWC"))
        x = jnp.maximum(x + b.reshape(1, 1, 1, cout), 0.0)
        cin = cout
    x = jnp.transpose(x, (0, 3, 1, 2))
    return x.reshape(x.shape[0], -1)


def _forward_ref(params, obs, next_obs, split_hidden=False):
    B = obs.shape[0]
    E = params["num_comps"]
    h = _encoder_ref(params["encoder"], obs)
    nh = _encoder_ref(params["encoder"], next_obs)
    joint = jnp.concatenate([h, nh], axis=-1)
    w1, b1, w2, b2 = params["trunks"]
    outs = []
    for e in range(E):
        x = joint
        if split_hidden:
            n = B // E
            x = joint[e * n:(e + 1) * n]
        z = jnp.maximum(x @ w1[e] + b1[e], 0.0)
        outs.append(z @ w2[e] + b2[e])
    return jnp.concatenate(outs, axis=0)


# ----------------------------------- Main -------------------------------------
if __name__ == "__main__":
    key = jax.random.PRNGKey(0)

    batch = 4
    obs_shape = (4, 36, 36)    # (C, H, W): smallest spatial the DQN stack supports cleanly
    action_shape = 6
    feature_dim = 32
    num_comps = 2

    kp, ko, kn = jax.random.split(key, 3)
    params = make_params(kp, obs_shape, action_shape, feature_dim, num_comps)
    obs = jax.random.normal(ko, (batch,) + obs_shape, jnp.float32)
    next_obs = jax.random.normal(kn, (batch,) + obs_shape, jnp.float32)

    out = dqn_cnn_ss_inv_predictor_ensem_forward(params, obs, next_obs,
                                                 split_hidden=False)
    out = jax.block_until_ready(out)
    out_split = dqn_cnn_ss_inv_predictor_ensem_forward(params, obs, next_obs,
                                                       split_hidden=True)
    out_split = jax.block_until_ready(out_split)

    ref = _forward_ref(params, obs, next_obs, split_hidden=False)
    ref_split = _forward_ref(params, obs, next_obs, split_hidden=True)

    assert out.shape == (num_comps * batch, action_shape)
    assert out_split.shape == (batch, action_shape)
    assert jnp.allclose(out, ref, atol=1e-3, rtol=1e-3)
    assert jnp.allclose(out_split, ref_split, atol=1e-3, rtol=1e-3)

    print("KERNEL_OK")
</pallas_src>

<mosaic_0001>
module attributes {stable_mosaic.version = 11 : i64} {
  func.func @_conv_mm_kernel(%arg0: memref<512x256xf32, #tpu.memory_space<vmem>>, %arg1: memref<256x32xf32, #tpu.memory_space<vmem>>, %arg2: memref<1x32xf32, #tpu.memory_space<vmem>>, %arg3: memref<512x32xf32, #tpu.memory_space<vmem>>) attributes {dimension_semantics = [], scalar_prefetch = 0 : i64, scratch_operands = 0 : i64, tpu.core_type = #tpu.core_type<tc>} {
    %c0 = arith.constant 0 : index
    %c0_0 = arith.constant 0 : index
    %0 = vector.load %arg0[%c0, %c0_0] : memref<512x256xf32, #tpu.memory_space<vmem>>, vector<512x256xf32>
    %c0_1 = arith.constant 0 : index
    %c0_2 = arith.constant 0 : index
    %1 = vector.load %arg1[%c0_1, %c0_2] : memref<256x32xf32, #tpu.memory_space<vmem>>, vector<256x32xf32>
    %cst = arith.constant dense<0.000000e+00> : vector<512x32xf32>
    %2 = tpu.matmul %0, %1, %cst {dimension_numbers = #tpu.dot_dimension_numbers<[1], [0], [0], [1], [0, 0, 1, 1], [], []>} : vector<512x256xf32>, vector<256x32xf32>, vector<512x32xf32> -> vector<512x32xf32>
    %c0_3 = arith.constant 0 : index
    %c0_4 = arith.constant 0 : index
    %3 = vector.load %arg2[%c0_3, %c0_4] : memref<1x32xf32, #tpu.memory_space<vmem>>, vector<1x32xf32>
    %4 = vector.broadcast %3 : vector<1x32xf32> to vector<512x32xf32>
    %5 = arith.addf %2, %4 : vector<512x32xf32>
    %cst_5 = arith.constant 0.000000e+00 : f32
    %6 = vector.broadcast %cst_5 : f32 to vector<512x32xf32>
    %7 = arith.maximumf %5, %6 : vector<512x32xf32>
    %c0_6 = arith.constant 0 : index
    %c0_7 = arith.constant 0 : index
    %8 = vector.load %arg3[%c0_6, %c0_7] : memref<512x32xf32, #tpu.memory_space<vmem>>, vector<512x32xf32>
    tpu.vector_store %arg3[%c0_6, %c0_7], %7 {strides = array<i32>} : memref<512x32xf32, #tpu.memory_space<vmem>>, vector<512x32xf32>,
    return
  }
}

</mosaic_0001>

<llo_original>
// kernel: tpu_custom_call.1
$region0: #{tpu_custom_call.1}
  #allocation0 [shape = 'u32[]', space=smem, size = 0x4, offset = 0x4, fixed_abs, tag = 'smem constant byte address 0x4 - core index']
  #allocation1 [shape = 'u32[144,128]{1,0:T(1,128)}', space=vmem, size = 0x12000, scoped, tag = 'internal scratch']
  %s0 = inlined_call_operand.hbm [shape: f32[512,256], index: 0, kind: input, shape index: {}]
  %s1 = inlined_call_operand.vmem [shape: f32[256,32], index: 1, kind: input, shape index: {}]
  %s2 = inlined_call_operand.vmem [shape: f32[1,32], index: 2, kind: input, shape index: {}]
  %s3 = inlined_call_operand.vmem [shape: f32[512,32], index: 3, kind: output, shape index: {}]
  %s4 = sld [smem:[#allocation0]]
  $region26: #{tpu_custom_call.1} parent=0
    _
  %s6 = ssub.s32 1, %s4
  %s7 = scalar_select 0, %s6, %s4
  $region1: #{tpu_custom_call.1} parent=0
    #allocation2 [shape = 'u8[524288]{0}', space=vmem, size = 0x80000, scoped, tag = 'input window, operand 0, single buffered']
    #allocation3 [shape = 's32[1]{0}', space=sflag, size = 0x4, scoped, tag = 'scoped memory for tpu_custom_call.1']
    %8 = vsyncpa [#allocation3], 0
    // Predicated region
    $region2: #{tpu_custom_call.1} parent=1 // pred_check
      _
    $region3: #{tpu_custom_call.1} parent=1 // pred_check_branch
      %10 = sbr.rel (0) target = $region5
    $region4: #{tpu_custom_call.1} parent=1 // pred_region
      %s12 = ssub.s32 16384, 16384
      %13 = vsyncadd [#allocation3], %s12
      %s14 = sshll.u32 [#allocation2], 4
      %s15 = int_to_ptr.vmem [resolvable:$true] %s14
      %20 = dma.hbm_to_vmem [thread:$0]  %s0, 16384, %s15, [#allocation3], 256, 256, 16
    $region5: #{tpu_custom_call.1} parent=1 // pred_fallthru
      _
    // Predicated region
    $region6: #{tpu_custom_call.1} parent=1 // pred_check
      _
    $region7: #{tpu_custom_call.1} parent=1 // pred_check_branch
      %22 = sbr.rel (0) target = $region9
    $region8: #{tpu_custom_call.1} parent=1 // pred_region
      _
    $region9: #{tpu_custom_call.1} parent=1 // pred_fallthru
      _
    // Predicated region
    $region10: #{tpu_custom_call.1} parent=1 // pred_check
      _
    $region11: #{tpu_custom_call.1} parent=1 // pred_check_branch
      %24 = sbr.rel (0) target = $region13
    $region12: #{tpu_custom_call.1} parent=1 // pred_region
      _
    $region13: #{tpu_custom_call.1} parent=1 // pred_fallthru
      _
    // Predicated region
    $region14: #{tpu_custom_call.1} parent=1 // pred_check
      _
    $region15: #{tpu_custom_call.1} parent=1 // pred_check_branch
      %26 = sbr.rel (0) target = $region17
    $region16: #{tpu_custom_call.1} parent=1 // pred_region
      %27 = dma.done [#allocation3], 16384
    $region17: #{tpu_custom_call.1} parent=1 // pred_fallthru
      _
    %v28 = vld [vmem:[#allocation2] sm:$0xff]
    %v29 = vld [vmem:[#allocation2 + $0x8] sm:$0xff]
    %v30 = vld [vmem:[#allocation2 + $0x10] sm:$0xff]
    %v31 = vld [vmem:[#allocation2 + $0x18] sm:$0xff]
    %v32 = vld [vmem:[#allocation2 + $0x20] sm:$0xff]
    %v33 = vld [vmem:[#allocation2 + $0x28] sm:$0xff]
    %v34 = vld [vmem:[#allocation2 + $0x30] sm:$0xff]
    %v35 = vld [vmem:[#allocation2 + $0x38] sm:$0xff]
    %v36 = vld [vmem:[#allocation2 + $0x40] sm:$0xff]
    %v37 = vld [vmem:[#allocation2 + $0x48] sm:$0xff]
    %v38 = vld [vmem:[#allocation2 + $0x50] sm:$0xff]
    %v39 = vld [vmem:[#allocation2 + $0x58] sm:$0xff]
    %v40 = vld [vmem:[#allocation2 + $0x60] sm:$0xff]
    %v41 = vld [vmem:[#allocation2 + $0x68] sm:$0xff]
    %v42 = vld [vmem:[#allocation2 + $0x70] sm:$0xff]
    %v43 = vld [vmem:[#allocation2 + $0x78] sm:$0xff]
    %v44 = vld [vmem:[#allocation2 + $0x80] sm:$0xff]
    %v45 = vld [vmem:[#allocation2 + $0x88] sm:$0xff]
    %v46 = vld [vmem:[#allocation2 + $0x90] sm:$0xff]
    %v47 = vld [vmem:[#allocation2 + $0x98] sm:$0xff]
    %v48 = vld [vmem:[#allocation2 + $0xa0] sm:$0xff]
    %v49 = vld [vmem:[#allocation2 + $0xa8] sm:$0xff]
    %v50 = vld [vmem:[#allocation2 + $0xb0] sm:$0xff]
    %v51 = vld [vmem:[#allocation2 + $0xb8] sm:$0xff]
    %v52 = vld [vmem:[#allocation2 + $0xc0] sm:$0xff]
    %v53 = vld [vmem:[#allocation2 + $0xc8] sm:$0xff]
    %v54 = vld [vmem:[#allocation2 + $0xd0] sm:$0xff]
    %v55 = vld [vmem:[#allocation2 + $0xd8] sm:$0xff]
    %v56 = vld [vmem:[#allocation2 + $0xe0] sm:$0xff]
    %v57 = vld [vmem:[#allocation2 + $0xe8] sm:$0xff]
    %v58 = vld [vmem:[#allocation2 + $0xf0] sm:$0xff]
    %v59 = vld [vmem:[#allocation2 + $0xf8] sm:$0xff]
    %v60 = vld [vmem:[#allocation2 + $0x100] sm:$0xff]
    %v61 = vld [vmem:[#allocation2 + $0x108] sm:$0xff]
    %v62 = vld [vmem:[#allocation2 + $0x110] sm:$0xff]
    %v63 = vld [vmem:[#allocation2 + $0x118] sm:$0xff]
    %v64 = vld [vmem:[#allocation2 + $0x120] sm:$0xff]
    %v65 = vld [vmem:[#allocation2 + $0x128] sm:$0xff]
    %v66 = vld [vmem:[#allocation2 + $0x130] sm:$0xff]
    %v67 = vld [vmem:[#allocation2 + $0x138] sm:$0xff]
    %v68 = vld [vmem:[#allocation2 + $0x140] sm:$0xff]
    %v69 = vld [vmem:[#allocation2 + $0x148] sm:$0xff]
    %v70 = vld [vmem:[#allocation2 + $0x150] sm:$0xff]
    %v71 = vld [vmem:[#allocation2 + $0x158] sm:$0xff]
    %v72 = vld [vmem:[#allocation2 + $0x160] sm:$0xff]
    %v73 = vld [vmem:[#allocation2 + $0x168] sm:$0xff]
    %v74 = vld [vmem:[#allocation2 + $0x170] sm:$0xff]
    %v75 = vld [vmem:[#allocation2 + $0x178] sm:$0xff]
    %v76 = vld [vmem:[#allocation2 + $0x180] sm:$0xff]
    %v77 = vld [vmem:[#allocation2 + $0x188] sm:$0xff]
    %v78 = vld [vmem:[#allocation2 + $0x190] sm:$0xff]
    %v79 = vld [vmem:[#allocation2 + $0x198] sm:$0xff]
    %v80 = vld [vmem:[#allocation2 + $0x1a0] sm:$0xff]
    %v81 = vld [vmem:[#allocation2 + $0x1a8] sm:$0xff]
    %v82 = vld [vmem:[#allocation2 + $0x1b0] sm:$0xff]
    %v83 = vld [vmem:[#allocation2 + $0x1b8] sm:$0xff]
    %v84 = vld [vmem:[#allocation2 + $0x1c0] sm:$0xff]
    %v85 = vld [vmem:[#allocation2 + $0x1c8] sm:$0xff]
    %v86 = vld [vmem:[#allocation2 + $0x1d0] sm:$0xff]
    %v87 = vld [vmem:[#allocation2 + $0x1d8] sm:$0xff]
    %v88 = vld [vmem:[#allocation2 + $0x1e0] sm:$0xff]
    %v89 = vld [vmem:[#allocation2 + $0x1e8] sm:$0xff]
    %v90 = vld [vmem:[#allocation2 + $0x1f0] sm:$0xff]
    %v91 = vld [vmem:[#allocation2 + $0x1f8] sm:$0xff]
    %v92 = vld [vmem:[#allocation2 + $0x200] sm:$0xff]
    %v93 = vld [vmem:[#allocation2 + $0x208] sm:$0xff]
    %v94 = vld [vmem:[#allocation2 + $0x210] sm:$0xff]
    %v95 = vld [vmem:[#allocation2 + $0x218] sm:$0xff]
    %v96 = vld [vmem:[#allocation2 + $0x220] sm:$0xff]
    %v97 = vld [vmem:[#allocation2 + $0x228] sm:$0xff]
    %v98 = vld [vmem:[#allocation2 + $0x230] sm:$0xff]
    %v99 = vld [vmem:[#allocation2 + $0x238] sm:$0xff]
    %v100 = vld [vmem:[#allocation2 + $0x240] sm:$0xff]
    %v101 = vld [vmem:[#allocation2 + $0x248] sm:$0xff]
    %v102 = vld [vmem:[#allocation2 + $0x250] sm:$0xff]
    %v103 = vld [vmem:[#allocation2 + $0x258] sm:$0xff]
    %v104 = vld [vmem:[#allocation2 + $0x260] sm:$0xff]
    %v105 = vld [vmem:[#allocation2 + $0x268] sm:$0xff]
    %v106 = vld [vmem:[#allocation2 + $0x270] sm:$0xff]
    %v107 = vld [vmem:[#allocation2 + $0x278] sm:$0xff]
    %v108 = vld [vmem:[#allocation2 + $0x280] sm:$0xff]
    %v109 = vld [vmem:[#allocation2 + $0x288] sm:$0xff]
    %v110 = vld [vmem:[#allocation2 + $0x290] sm:$0xff]
    %v111 = vld [vmem:[#allocation2 + $0x298] sm:$0xff]
    %v112 = vld [vmem:[#allocation2 + $0x2a0] sm:$0xff]
    %v113 = vld [vmem:[#allocation2 + $0x2a8] sm:$0xff]
    %v114 = vld [vmem:[#allocation2 + $0x2b0] sm:$0xff]
    %v115 = vld [vmem:[#allocation2 + $0x2b8] sm:$0xff]
    %v116 = vld [vmem:[#allocation2 + $0x2c0] sm:$0xff]
    %v117 = vld [vmem:[#allocation2 + $0x2c8] sm:$0xff]
    %v118 = vld [vmem:[#allocation2 + $0x2d0] sm:$0xff]
    %v119 = vld [vmem:[#allocation2 + $0x2d8] sm:$0xff]
    %v120 = vld [vmem:[#allocation2 + $0x2e0] sm:$0xff]
    %v121 = vld [vmem:[#allocation2 + $0x2e8] sm:$0xff]
    %v122 = vld [vmem:[#allocation2 + $0x2f0] sm:$0xff]
    %v123 = vld [vmem:[#allocation2 + $0x2f8] sm:$0xff]
    %v124 = vld [vmem:[#allocation2 + $0x300] sm:$0xff]
    %v125 = vld [vmem:[#allocation2 + $0x308] sm:$0xff]
    %v126 = vld [vmem:[#allocation2 + $0x310] sm:$0xff]
    %v127 = vld [vmem:[#allocation2 + $0x318] sm:$0xff]
    %v128 = vld [vmem:[#allocation2 + $0x320] sm:$0xff]
    %v129 = vld [vmem:[#allocation2 + $0x328] sm:$0xff]
    %v130 = vld [vmem:[#allocation2 + $0x330] sm:$0xff]
    %v131 = vld [vmem:[#allocation2 + $0x338] sm:$0xff]
    %v132 = vld [vmem:[#allocation2 + $0x340] sm:$0xff]
    %v133 = vld [vmem:[#allocation2 + $0x348] sm:$0xff]
    %v134 = vld [vmem:[#allocation2 + $0x350] sm:$0xff]
    %v135 = vld [vmem:[#allocation2 + $0x358] sm:$0xff]
    %v136 = vld [vmem:[#allocation2 + $0x360] sm:$0xff]
    %v137 = vld [vmem:[#allocation2 + $0x368] sm:$0xff]
    %v138 = vld [vmem:[#allocation2 + $0x370] sm:$0xff]
    %v139 = vld [vmem:[#allocation2 + $0x378] sm:$0xff]
    %v140 = vld [vmem:[#allocation2 + $0x380] sm:$0xff]
    %v141 = vld [vmem:[#allocation2 + $0x388] sm:$0xff]
    %v142 = vld [vmem:[#allocation2 + $0x390] sm:$0xff]
    %v143 = vld [vmem:[#allocation2 + $0x398] sm:$0xff]
    %v144 = vld [vmem:[#allocation2 + $0x3a0] sm:$0xff]
    %v145 = vld [vmem:[#allocation2 + $0x3a8] sm:$0xff]
    %v146 = vld [vmem:[#allocation2 + $0x3b0] sm:$0xff]
    %v147 = vld [vmem:[#allocation2 + $0x3b8] sm:$0xff]
    %v148 = vld [vmem:[#allocation2 + $0x3c0] sm:$0xff]
    %v149 = vld [vmem:[#allocation2 + $0x3c8] sm:$0xff]
    %v150 = vld [vmem:[#allocation2 + $0x3d0] sm:$0xff]
    %v151 = vld [vmem:[#allocation2 + $0x3d8] sm:$0xff]
    %v152 = vld [vmem:[#allocation2 + $0x3e0] sm:$0xff]
    %v153 = vld [vmem:[#allocation2 + $0x3e8] sm:$0xff]
    %v154 = vld [vmem:[#allocation2 + $0x3f0] sm:$0xff]
    %v155 = vld [vmem:[#allocation2 + $0x3f8] sm:$0xff]
    %v156 = vld [vmem:[%s1] sm:$0xff]
    %v157 = vld [vmem:[%s1 + $0x8] sm:$0xff]
    %v158 = vld [vmem:[%s1 + $0x10] sm:$0xff]
    %v159 = vld [vmem:[%s1 + $0x18] sm:$0xff]
    %v160 = vld [vmem:[%s1 + $0x20] sm:$0xff]
    %v161 = vld [vmem:[%s1 + $0x28] sm:$0xff]
    %v162 = vld [vmem:[%s1 + $0x30] sm:$0xff]
    %v163 = vld [vmem:[%s1 + $0x38] sm:$0xff]
    %v164 = vld [vmem:[%s1 + $0x40] sm:$0xff]
    %v165 = vld [vmem:[%s1 + $0x48] sm:$0xff]
    %v166 = vld [vmem:[%s1 + $0x50] sm:$0xff]
    %v167 = vld [vmem:[%s1 + $0x58] sm:$0xff]
    %v168 = vld [vmem:[%s1 + $0x60] sm:$0xff]
    %v169 = vld [vmem:[%s1 + $0x68] sm:$0xff]
    %v170 = vld [vmem:[%s1 + $0x70] sm:$0xff]
    %v171 = vld [vmem:[%s1 + $0x78] sm:$0xff]
    %v172 = vld [vmem:[%s1 + $0x80] sm:$0xff]
    %v173 = vld [vmem:[%s1 + $0x88] sm:$0xff]
    %v174 = vld [vmem:[%s1 + $0x90] sm:$0xff]
    %v175 = vld [vmem:[%s1 + $0x98] sm:$0xff]
    %v176 = vld [vmem:[%s1 + $0xa0] sm:$0xff]
    %v177 = vld [vmem:[%s1 + $0xa8] sm:$0xff]
    %v178 = vld [vmem:[%s1 + $0xb0] sm:$0xff]
    %v179 = vld [vmem:[%s1 + $0xb8] sm:$0xff]
    %v180 = vld [vmem:[%s1 + $0xc0] sm:$0xff]
    %v181 = vld [vmem:[%s1 + $0xc8] sm:$0xff]
    %v182 = vld [vmem:[%s1 + $0xd0] sm:$0xff]
    %v183 = vld [vmem:[%s1 + $0xd8] sm:$0xff]
    %v184 = vld [vmem:[%s1 + $0xe0] sm:$0xff]
    %v185 = vld [vmem:[%s1 + $0xe8] sm:$0xff]
    %v186 = vld [vmem:[%s1 + $0xf0] sm:$0xff]
    %v187 = vld [vmem:[%s1 + $0xf8] sm:$0xff]
    %v188 = vld [vmem:[%s2] sm:$0x1]
    %v190 = vlaneseq
    %v191 = vshrl.u32 %v190, 7
    %v192 = vsub.s32 0, %v191
    %v193 = vrot.slane %v188, %v192
    %195 = vmatprep.subr.mxu0 0.0
    %196 = vmatpush1.msra.mxu0 %v156
    %197 = vmatprep.subr.mxu0 0.0
    %198 = vmatpush1.msra.mxu0 %v157
    %199 = vmatprep.subr.mxu0 0.0
    %200 = vmatpush1.msra.mxu0 %v158
    %201 = vmatprep.subr.mxu0 0.0
    %202 = vmatpush1.msra.mxu0 %v159
    %203 = vmatprep.subr.mxu0 0.0
    %204 = vmatpush1.msra.mxu0 %v160
    %205 = vmatprep.subr.mxu0 0.0
    %206 = vmatpush1.msra.mxu0 %v161
    %207 = vmatprep.subr.mxu0 0.0
    %208 = vmatpush1.msra.mxu0 %v162
    %209 = vmatprep.subr.mxu0 0.0
    %210 = vmatpush1.msra.mxu0 %v163
    %211 = vmatprep.subr.mxu0 0.0
    %212 = vmatpush1.msra.mxu0 %v164
    %213 = vmatprep.subr.mxu0 0.0
    %214 = vmatpush1.msra.mxu0 %v165
    %215 = vmatprep.subr.mxu0 0.0
    %216 = vmatpush1.msra.mxu0 %v166
    %217 = vmatprep.subr.mxu0 0.0
    %218 = vmatpush1.msra.mxu0 %v167
    %219 = vmatprep.subr.mxu0 0.0
    %220 = vmatpush1.msra.mxu0 %v168
    %221 = vmatprep.subr.mxu0 0.0
    %222 = vmatpush1.msra.mxu0 %v169
    %223 = vmatprep.subr.mxu0 0.0
    %224 = vmatpush1.msra.mxu0 %v170
    %225 = vmatprep.subr.mxu0 0.0
    %226 = vmatpush1.msra.mxu0 %v171
    %227 = vmatprep.subr.mxu0 0.0
    %228 = vmatpush1.msra.mxu0 %v172
    %229 = vmatprep.subr.mxu0 0.0
    %230 = vmatpush1.msra.mxu0 %v173
    %231 = vmatprep.subr.mxu0 0.0
    %232 = vmatpush1.msra.mxu0 %v174
    %233 = vmatprep.subr.mxu0 0.0
    %234 = vmatpush1.msra.mxu0 %v175
    %235 = vmatprep.subr.mxu0 0.0
    %236 = vmatpush1.msra.mxu0 %v176
    %237 = vmatprep.subr.mxu0 0.0
    %238 = vmatpush1.msra.mxu0 %v177
    %239 = vmatprep.subr.mxu0 0.0
    %240 = vmatpush1.msra.mxu0 %v178
    %241 = vmatprep.subr.mxu0 0.0
    %242 = vmatpush1.msra.mxu0 %v179
    %243 = vmatprep.subr.mxu0 0.0
    %244 = vmatpush1.msra.mxu0 %v180
    %245 = vmatprep.subr.mxu0 0.0
    %246 = vmatpush1.msra.mxu0 %v181
    %247 = vmatprep.subr.mxu0 0.0
    %248 = vmatpush1.msra.mxu0 %v182
    %249 = vmatprep.subr.mxu0 0.0
    %250 = vmatpush1.msra.mxu0 %v183
    %251 = vmatprep.subr.mxu0 0.0
    %252 = vmatpush1.msra.mxu0 %v184
    %253 = vmatprep.subr.mxu0 0.0
    %254 = vmatpush1.msra.mxu0 %v185
    %255 = vmatprep.subr.mxu0 0.0
    %256 = vmatpush1.msra.mxu0 %v186
    %257 = vmatprep.subr.mxu0 0.0
    %258 = vmatpush1.msra.mxu0 %v187
    %259 = vmatprep.mubr.f32.mxu0 %v29
    %260 = vmatmul.mubr.f32.gmra.mrb[0].mxu0 %v28
    %v261 = vpop.f32.mrb[0].mxu0
    %v262 = vadd.f32 %v193, %v261
    %v263 = vpop.f32.mrb[0].mxu0
    %264 = vmatprep.mubr.f32.mxu0 %v31
    %265 = vmatmul.mubr.f32.gmra.mrb[0].mxu0 %v30
    %v266 = vpop.f32.mrb[0].mxu0
    %v267 = vadd.f32 %v193, %v266
    %v268 = vpop.f32.mrb[0].mxu0
    %269 = vmatprep.mubr.f32.mxu0 %v33
    %270 = vmatmul.mubr.f32.gmra.mrb[0].mxu0 %v32
    %v271 = vpop.f32.mrb[0].mxu0
    %v272 = vadd.f32 %v193, %v271
    %v273 = vpop.f32.mrb[0].mxu0
    %274 = vmatprep.mubr.f32.mxu0 %v35
    %275 = vmatmul.mubr.f32.gmra.mrb[0].mxu0 %v34
    %v276 = vpop.f32.mrb[0].mxu0
    %v277 = vadd.f32 %v193, %v276
    %v278 = vpop.f32.mrb[0].mxu0
    %279 = vmatprep.mubr.f32.mxu0 %v37
    %280 = vmatmul.mubr.f32.gmra.mrb[0].mxu0 %v36
    %v281 = vpop.f32.mrb[0].mxu0
    %v282 = vadd.f32 %v193, %v281
    %v283 = vpop.f32.mrb[0].mxu0
    %284 = vmatprep.mubr.f32.mxu0 %v39
    %285 = vmatmul.mubr.f32.gmra.mrb[0].mxu0 %v38
    %v286 = vpop.f32.mrb[0].mxu0
    %v287 = vadd.f32 %v193, %v286
    %v288 = vpop.f32.mrb[0].mxu0
    %289 = vmatprep.mubr.f32.mxu0 %v41
    %290 = vmatmul.mubr.f32.gmra.mrb[0].mxu0 %v40
    %v291 = vpop.f32.mrb[0].mxu0
    %v292 = vadd.f32 %v193, %v291
    %v293 = vpop.f32.mrb[0].mxu0
    %294 = vmatprep.mubr.f32.mxu0 %v43
    %295 = vmatmul.mubr.f32.gmra.mrb[0].mxu0 %v42
    %v296 = vpop.f32.mrb[0].mxu0
    %v297 = vadd.f32 %v193, %v296
    %v298 = vpop.f32.mrb[0].mxu0
    %299 = vmatprep.mubr.f32.mxu0 %v45
    %300 = vmatmul.mubr.f32.gmra.mrb[0].mxu0 %v44
    %v301 = vpop.f32.mrb[0].mxu0
    %v302 = vadd.f32 %v193, %v301
    %v303 = vpop.f32.mrb[0].mxu0
    %304 = vmatprep.mubr.f32.mxu0 %v47
    %305 = vmatmul.mubr.f32.gmra.mrb[0].mxu0 %v46
    %v306 = vpop.f32.mrb[0].mxu0
    %v307 = vadd.f32 %v193, %v306
    %v308 = vpop.f32.mrb[0].mxu0
    %309 = vmatprep.mubr.f32.mxu0 %v49
    %310 = vmatmul.mubr.f32.gmra.mrb[0].mxu0 %v48
    %v311 = vpop.f32.mrb[0].mxu0
    %v312 = vadd.f32 %v193, %v311
    %v313 = vpop.f32.mrb[0].mxu0
    %314 = vmatprep.mubr.f32.mxu0 %v51
    %315 = vmatmul.mubr.f32.gmra.mrb[0].mxu0 %v50
    %v316 = vpop.f32.mrb[0].mxu0
    %v317 = vadd.f32 %v193, %v316
    %v318 = vpop.f32.mrb[0].mxu0
    %319 = vmatprep.mubr.f32.mxu0 %v53
    %320 = vmatmul.mubr.f32.gmra.mrb[0].mxu0 %v52
    %v321 = vpop.f32.mrb[0].mxu0
    %v322 = vadd.f32 %v193, %v321
    %v323 = vpop.f32.mrb[0].mxu0
    %324 = vmatprep.mubr.f32.mxu0 %v55
    %325 = vmatmul.mubr.f32.gmra.mrb[0].mxu0 %v54
    %v326 = vpop.f32.mrb[0].mxu0
    %v327 = vadd.f32 %v193, %v326
    %v328 = vpop.f32.mrb[0].mxu0
    %329 = vmatprep.mubr.f32.mxu0 %v57
    %330 = vmatmul.mubr.f32.gmra.mrb[0].mxu0 %v56
    %v331 = vpop.f32.mrb[0].mxu0
    %v332 = vadd.f32 %v193, %v331
    %v333 = vpop.f32.mrb[0].mxu0
    %334 = vmatprep.mubr.f32.mxu0 %v59
    %335 = vmatmul.mubr.f32.gmra.mrb[0].mxu0 %v58
    %v336 = vpop.f32.mrb[0].mxu0
    %v337 = vadd.f32 %v193, %v336
    %v338 = vpop.f32.mrb[0].mxu0
    %339 = vmatprep.mubr.f32.mxu0 %v61
    %340 = vmatmul.mubr.f32.gmra.mrb[0].mxu0 %v60
    %v341 = vpop.f32.mrb[0].mxu0
    %v342 = vadd.f32 %v193, %v341
    %v343 = vpop.f32.mrb[0].mxu0
    %344 = vmatprep.mubr.f32.mxu0 %v63
    %345 = vmatmul.mubr.f32.gmra.mrb[0].mxu0 %v62
    %v346 = vpop.f32.mrb[0].mxu0
    %v347 = vadd.f32 %v193, %v346
    %v348 = vpop.f32.mrb[0].mxu0
    %349 = vmatprep.mubr.f32.mxu0 %v65
    %350 = vmatmul.mubr.f32.gmra.mrb[0].mxu0 %v64
    %v351 = vpop.f32.mrb[0].mxu0
    %v352 = vadd.f32 %v193, %v351
    %v353 = vpop.f32.mrb[0].mxu0
    %354 = vmatprep.mubr.f32.mxu0 %v67
    %355 = vmatmul.mubr.f32.gmra.mrb[0].mxu0 %v66
    %v356 = vpop.f32.mrb[0].mxu0
    %v357 = vadd.f32 %v193, %v356
    %v358 = vpop.f32.mrb[0].mxu0
    %359 = vmatprep.mubr.f32.mxu0 %v69
    %360 = vmatmul.mubr.f32.gmra.mrb[0].mxu0 %v68
    %v361 = vpop.f32.mrb[0].mxu0
    %v362 = vadd.f32 %v193, %v361
    %v363 = vpop.f32.mrb[0].mxu0
    %364 = vmatprep.mubr.f32.mxu0 %v71
    %365 = vmatmul.mubr.f32.gmra.mrb[0].mxu0 %v70
    %v366 = vpop.f32.mrb[0].mxu0
    %v367 = vadd.f32 %v193, %v366
    %v368 = vpop.f32.mrb[0].mxu0
    %369 = vmatprep.mubr.f32.mxu0 %v73
    %370 = vmatmul.mubr.f32.gmra.mrb[0].mxu0 %v72
    %v371 = vpop.f32.mrb[0].mxu0
    %v372 = vadd.f32 %v193, %v371
    %v373 = vpop.f32.mrb[0].mxu0
    %374 = vmatprep.mubr.f32.mxu0 %v75
    %375 = vmatmul.mubr.f32.gmra.mrb[0].mxu0 %v74
    %v376 = vpop.f32.mrb[0].mxu0
    %v377 = vadd.f32 %v193, %v376
    %v378 = vpop.f32.mrb[0].mxu0
    %379 = vmatprep.mubr.f32.mxu0 %v77
    %380 = vmatmul.mubr.f32.gmra.mrb[0].mxu0 %v76
    %v381 = vpop.f32.mrb[0].mxu0
    %v382 = vadd.f32 %v193, %v381
    %v383 = vpop.f32.mrb[0].mxu0
    %384 = vmatprep.mubr.f32.mxu0 %v79
    %385 = vmatmul.mubr.f32.gmra.mrb[0].mxu0 %v78
    %v386 = vpop.f32.mrb[0].mxu0
    %v387 = vadd.f32 %v193, %v386
    %v388 = vpop.f32.mrb[0].mxu0
    %389 = vmatprep.mubr.f32.mxu0 %v81
    %390 = vmatmul.mubr.f32.gmra.mrb[0].mxu0 %v80
    %v391 = vpop.f32.mrb[0].mxu0
    %v392 = vadd.f32 %v193, %v391
    %v393 = vpop.f32.mrb[0].mxu0
    %394 = vmatprep.mubr.f32.mxu0 %v83
    %395 = vmatmul.mubr.f32.gmra.mrb[0].mxu0 %v82
    %v396 = vpop.f32.mrb[0].mxu0
    %v397 = vadd.f32 %v193, %v396
    %v398 = vpop.f32.mrb[0].mxu0
    %399 = vmatprep.mubr.f32.mxu0 %v85
    %400 = vmatmul.mubr.f32.gmra.mrb[0].mxu0 %v84
    %v401 = vpop.f32.mrb[0].mxu0
    %v402 = vadd.f32 %v193, %v401
    %v403 = vpop.f32.mrb[0].mxu0
    %404 = vmatprep.mubr.f32.mxu0 %v87
    %405 = vmatmul.mubr.f32.gmra.mrb[0].mxu0 %v86
    %v406 = vpop.f32.mrb[0].mxu0
    %v407 = vadd.f32 %v193, %v406
    %v408 = vpop.f32.mrb[0].mxu0
    %409 = vmatprep.mubr.f32.mxu0 %v89
    %410 = vmatmul.mubr.f32.gmra.mrb[0].mxu0 %v88
    %v411 = vpop.f32.mrb[0].mxu0
    %v412 = vadd.f32 %v193, %v411
    %v413 = vpop.f32.mrb[0].mxu0
    %414 = vmatprep.mubr.f32.mxu0 %v91
    %415 = vmatmul.mubr.f32.gmra.mrb[0].mxu0 %v90
    %v416 = vpop.f32.mrb[0].mxu0
    %v417 = vadd.f32 %v193, %v416
    %v418 = vpop.f32.mrb[0].mxu0
    %419 = vmatprep.mubr.f32.mxu0 %v93
    %420 = vmatmul.mubr.f32.gmra.mrb[0].mxu0 %v92
    %v421 = vpop.f32.mrb[0].mxu0
    %v422 = vadd.f32 %v193, %v421
    %v423 = vpop.f32.mrb[0].mxu0
    %424 = vmatprep.mubr.f32.mxu0 %v95
    %425 = vmatmul.mubr.f32.gmra.mrb[0].mxu0 %v94
    %v426 = vpop.f32.mrb[0].mxu0
    %v427 = vadd.f32 %v193, %v426
    %v428 = vpop.f32.mrb[0].mxu0
    %429 = vmatprep.mubr.f32.mxu0 %v97
    %430 = vmatmul.mubr.f32.gmra.mrb[0].mxu0 %v96
    %v431 = vpop.f32.mrb[0].mxu0
    %v432 = vadd.f32 %v193, %v431
    %v433 = vpop.f32.mrb[0].mxu0
    %434 = vmatprep.mubr.f32.mxu0 %v99
    %435 = vmatmul.mubr.f32.gmra.mrb[0].mxu0 %v98
    %v436 = vpop.f32.mrb[0].mxu0
    %v437 = vadd.f32 %v193, %v436
    %v438 = vpop.f32.mrb[0].mxu0
    %439 = vmatprep.mubr.f32.mxu0 %v101
    %440 = vmatmul.mubr.f32.gmra.mrb[0].mxu0 %v100
    %v441 = vpop.f32.mrb[0].mxu0
    %v442 = vadd.f32 %v193, %v441
    %v443 = vpop.f32.mrb[0].mxu0
    %444 = vmatprep.mubr.f32.mxu0 %v103
    %445 = vmatmul.mubr.f32.gmra.mrb[0].mxu0 %v102
    %v446 = vpop.f32.mrb[0].mxu0
    %v447 = vadd.f32 %v193, %v446
    %v448 = vpop.f32.mrb[0].mxu0
    %449 = vmatprep.mubr.f32.mxu0 %v105
    %450 = vmatmul.mubr.f32.gmra.mrb[0].mxu0 %v104
    %v451 = vpop.f32.mrb[0].mxu0
    %v452 = vadd.f32 %v193, %v451
    %v453 = vpop.f32.mrb[0].mxu0
    %454 = vmatprep.mubr.f32.mxu0 %v107
    %455 = vmatmul.mubr.f32.gmra.mrb[0].mxu0 %v106
    %v456 = vpop.f32.mrb[0].mxu0
    %v457 = vadd.f32 %v193, %v456
    %v458 = vpop.f32.mrb[0].mxu0
    %459 = vmatprep.mubr.f32.mxu0 %v109
    %460 = vmatmul.mubr.f32.gmra.mrb[0].mxu0 %v108
    %v461 = vpop.f32.mrb[0].mxu0
    %v462 = vadd.f32 %v193, %v461
    %v463 = vpop.f32.mrb[0].mxu0
    %464 = vmatprep.mubr.f32.mxu0 %v111
    %465 = vmatmul.mubr.f32.gmra.mrb[0].mxu0 %v110
    %v466 = vpop.f32.mrb[0].mxu0
    %v467 = vadd.f32 %v193, %v466
    %v468 = vpop.f32.mrb[0].mxu0
    %469 = vmatprep.mubr.f32.mxu0 %v113
    %470 = vmatmul.mubr.f32.gmra.mrb[0].mxu0 %v112
    %v471 = vpop.f32.mrb[0].mxu0
    %v472 = vadd.f32 %v193, %v471
    %v473 = vpop.f32.mrb[0].mxu0
    %474 = vmatprep.mubr.f32.mxu0 %v115
    %475 = vmatmul.mubr.f32.gmra.mrb[0].mxu0 %v114
    %v476 = vpop.f32.mrb[0].mxu0
    %v477 = vadd.f32 %v193, %v476
    %v478 = vpop.f32.mrb[0].mxu0
    %479 = vmatprep.mubr.f32.mxu0 %v117
    %480 = vmatmul.mubr.f32.gmra.mrb[0].mxu0 %v116
    %v481 = vpop.f32.mrb[0].mxu0
    %v482 = vadd.f32 %v193, %v481
    %v483 = vpop.f32.mrb[0].mxu0
    %484 = vmatprep.mubr.f32.mxu0 %v119
    %485 = vmatmul.mubr.f32.gmra.mrb[0].mxu0 %v118
    %v486 = vpop.f32.mrb[0].mxu0
    %v487 = vadd.f32 %v193, %v486
    %v488 = vpop.f32.mrb[0].mxu0
    %489 = vmatprep.mubr.f32.mxu0 %v121
    %490 = vmatmul.mubr.f32.gmra.mrb[0].mxu0 %v120
    %v491 = vpop.f32.mrb[0].mxu0
    %v492 = vadd.f32 %v193, %v491
    %v493 = vpop.f32.mrb[0].mxu0
    %494 = vmatprep.mubr.f32.mxu0 %v123
    %495 = vmatmul.mubr.f32.gmra.mrb[0].mxu0 %v122
    %v496 = vpop.f32.mrb[0].mxu0
    %v497 = vadd.f32 %v193, %v496
    %v498 = vpop.f32.mrb[0].mxu0
    %499 = vmatprep.mubr.f32.mxu0 %v125
    %500 = vmatmul.mubr.f32.gmra.mrb[0].mxu0 %v124
    %v501 = vpop.f32.mrb[0].mxu0
    %v502 = vadd.f32 %v193, %v501
    %v503 = vpop.f32.mrb[0].mxu0
    %504 = vmatprep.mubr.f32.mxu0 %v127
    %505 = vmatmul.mubr.f32.gmra.mrb[0].mxu0 %v126
    %v506 = vpop.f32.mrb[0].mxu0
    %v507 = vadd.f32 %v193, %v506
    %v508 = vpop.f32.mrb[0].mxu0
    %509 = vmatprep.mubr.f32.mxu0 %v129
    %510 = vmatmul.mubr.f32.gmra.mrb[0].mxu0 %v128
    %v511 = vpop.f32.mrb[0].mxu0
    %v512 = vadd.f32 %v193, %v511
    %v513 = vpop.f32.mrb[0].mxu0
    %514 = vmatprep.mubr.f32.mxu0 %v131
    %515 = vmatmul.mubr.f32.gmra.mrb[0].mxu0 %v130
    %v516 = vpop.f32.mrb[0].mxu0
    %v517 = vadd.f32 %v193, %v516
    %v518 = vpop.f32.mrb[0].mxu0
    %519 = vmatprep.mubr.f32.mxu0 %v133
    %520 = vmatmul.mubr.f32.gmra.mrb[0].mxu0 %v132
    %v521 = vpop.f32.mrb[0].mxu0
    %v522 = vadd.f32 %v193, %v521
    %v523 = vpop.f32.mrb[0].mxu0
    %524 = vmatprep.mubr.f32.mxu0 %v135
    %525 = vmatmul.mubr.f32.gmra.mrb[0].mxu0 %v134
    %v526 = vpop.f32.mrb[0].mxu0
    %v527 = vadd.f32 %v193, %v526
    %v528 = vpop.f32.mrb[0].mxu0
    %529 = vmatprep.mubr.f32.mxu0 %v137
    %530 = vmatmul.mubr.f32.gmra.mrb[0].mxu0 %v136
    %v531 = vpop.f32.mrb[0].mxu0
    %v532 = vadd.f32 %v193, %v531
    %v533 = vpop.f32.mrb[0].mxu0
    %534 = vmatprep.mubr.f32.mxu0 %v139
    %535 = vmatmul.mubr.f32.gmra.mrb[0].mxu0 %v138
    %v536 = vpop.f32.mrb[0].mxu0
    %v537 = vadd.f32 %v193, %v536
    %v538 = vpop.f32.mrb[0].mxu0
    %539 = vmatprep.mubr.f32.mxu0 %v141
    %540 = vmatmul.mubr.f32.gmra.mrb[0].mxu0 %v140
    %v541 = vpop.f32.mrb[0].mxu0
    %v542 = vadd.f32 %v193, %v541
    %v543 = vpop.f32.mrb[0].mxu0
    %544 = vmatprep.mubr.f32.mxu0 %v143
    %545 = vmatmul.mubr.f32.gmra.mrb[0].mxu0 %v142
    %v546 = vpop.f32.mrb[0].mxu0
    %v547 = vadd.f32 %v193, %v546
    %v548 = vpop.f32.mrb[0].mxu0
    %549 = vmatprep.mubr.f32.mxu0 %v145
    %550 = vmatmul.mubr.f32.gmra.mrb[0].mxu0 %v144
    %v551 = vpop.f32.mrb[0].mxu0
    %v552 = vadd.f32 %v193, %v551
    %v553 = vpop.f32.mrb[0].mxu0
    %554 = vmatprep.mubr.f32.mxu0 %v147
    %555 = vmatmul.mubr.f32.gmra.mrb[0].mxu0 %v146
    %v556 = vpop.f32.mrb[0].mxu0
    %v557 = vadd.f32 %v193, %v556
    %v558 = vpop.f32.mrb[0].mxu0
    %559 = vmatprep.mubr.f32.mxu0 %v149
    %560 = vmatmul.mubr.f32.gmra.mrb[0].mxu0 %v148
    %v561 = vpop.f32.mrb[0].mxu0
    %v562 = vadd.f32 %v193, %v561
    %v563 = vpop.f32.mrb[0].mxu0
    %564 = vmatprep.mubr.f32.mxu0 %v151
    %565 = vmatmul.mubr.f32.gmra.mrb[0].mxu0 %v150
    %v566 = vpop.f32.mrb[0].mxu0
    %v567 = vadd.f32 %v193, %v566
    %v568 = vpop.f32.mrb[0].mxu0
    %569 = vmatprep.mubr.f32.mxu0 %v153
    %570 = vmatmul.mubr.f32.gmra.mrb[0].mxu0 %v152
    %v571 = vpop.f32.mrb[0].mxu0
    %v572 = vadd.f32 %v193, %v571
    %v573 = vpop.f32.mrb[0].mxu0
    %574 = vmatprep.mubr.f32.mxu0 %v155
    %575 = vmatmul.mubr.f32.gmra.mrb[0].mxu0 %v154
    %v576 = vpop.f32.mrb[0].mxu0
    %v577 = vadd.f32 %v193, %v576
    %v578 = vpop.f32.mrb[0].mxu0
    %579 = vdwg.mxu0
    %v580 = vmax.f32 %v262, 0.0
    %v581 = vmax.f32 %v267, 0.0
    %v582 = vmax.f32 %v272, 0.0
    %v583 = vmax.f32 %v277, 0.0
    %v584 = vmax.f32 %v282, 0.0
    %v585 = vmax.f32 %v287, 0.0
    %v586 = vmax.f32 %v292, 0.0
    %v587 = vmax.f32 %v297, 0.0
    %v588 = vmax.f32 %v302, 0.0
    %v589 = vmax.f32 %v307, 0.0
    %v590 = vmax.f32 %v312, 0.0
    %v591 = vmax.f32 %v317, 0.0
    %v592 = vmax.f32 %v322, 0.0
    %v593 = vmax.f32 %v327, 0.0
    %v594 = vmax.f32 %v332, 0.0
    %v595 = vmax.f32 %v337, 0.0
    %v596 = vmax.f32 %v342, 0.0
    %v597 = vmax.f32 %v347, 0.0
    %v598 = vmax.f32 %v352, 0.0
    %v599 = vmax.f32 %v357, 0.0
    %v600 = vmax.f32 %v362, 0.0
    %v601 = vmax.f32 %v367, 0.0
    %v602 = vmax.f32 %v372, 0.0
    %v603 = vmax.f32 %v377, 0.0
    %v604 = vmax.f32 %v382, 0.0
    %v605 = vmax.f32 %v387, 0.0
    %v606 = vmax.f32 %v392, 0.0
    %v607 = vmax.f32 %v397, 0.0
    %v608 = vmax.f32 %v402, 0.0
    %v609 = vmax.f32 %v407, 0.0
    %v610 = vmax.f32 %v412, 0.0
    %v611 = vmax.f32 %v417, 0.0
    %v612 = vmax.f32 %v422, 0.0
    %v613 = vmax.f32 %v427, 0.0
    %v614 = vmax.f32 %v432, 0.0
    %v615 = vmax.f32 %v437, 0.0
    %v616 = vmax.f32 %v442, 0.0
    %v617 = vmax.f32 %v447, 0.0
    %v618 = vmax.f32 %v452, 0.0
    %v619 = vmax.f32 %v457, 0.0
    %v620 = vmax.f32 %v462, 0.0
    %v621 = vmax.f32 %v467, 0.0
    %v622 = vmax.f32 %v472, 0.0
    %v623 = vmax.f32 %v477, 0.0
    %v624 = vmax.f32 %v482, 0.0
    %v625 = vmax.f32 %v487, 0.0
    %v626 = vmax.f32 %v492, 0.0
    %v627 = vmax.f32 %v497, 0.0
    %v628 = vmax.f32 %v502, 0.0
    %v629 = vmax.f32 %v507, 0.0
    %v630 = vmax.f32 %v512, 0.0
    %v631 = vmax.f32 %v517, 0.0
    %v632 = vmax.f32 %v522, 0.0
    %v633 = vmax.f32 %v527, 0.0
    %v634 = vmax.f32 %v532, 0.0
    %v635 = vmax.f32 %v537, 0.0
    %v636 = vmax.f32 %v542, 0.0
    %v637 = vmax.f32 %v547, 0.0
    %v638 = vmax.f32 %v552, 0.0
    %v639 = vmax.f32 %v557, 0.0
    %v640 = vmax.f32 %v562, 0.0
    %v641 = vmax.f32 %v567, 0.0
    %v642 = vmax.f32 %v572, 0.0
    %v643 = vmax.f32 %v577, 0.0
    %vm644 = vcmask 261120
    %645 = vst.msk [vmem:[%s3] sm:$0xff] %vm644, %v580
    %646 = vst.msk [vmem:[%s3 + $0x8] sm:$0xff] %vm644, %v581
    %647 = vst.msk [vmem:[%s3 + $0x10] sm:$0xff] %vm644, %v582
    %648 = vst.msk [vmem:[%s3 + $0x18] sm:$0xff] %vm644, %v583
    %649 = vst.msk [vmem:[%s3 + $0x20] sm:$0xff] %vm644, %v584
    %650 = vst.msk [vmem:[%s3 + $0x28] sm:$0xff] %vm644, %v585
    %651 = vst.msk [vmem:[%s3 + $0x30] sm:$0xff] %vm644, %v586
    %652 = vst.msk [vmem:[%s3 + $0x38] sm:$0xff] %vm644, %v587
    %653 = vst.msk [vmem:[%s3 + $0x40] sm:$0xff] %vm644, %v588
    %654 = vst.msk [vmem:[%s3 + $0x48] sm:$0xff] %vm644, %v589
    %655 = vst.msk [vmem:[%s3 + $0x50] sm:$0xff] %vm644, %v590
    %656 = vst.msk [vmem:[%s3 + $0x58] sm:$0xff] %vm644, %v591
    %657 = vst.msk [vmem:[%s3 + $0x60] sm:$0xff] %vm644, %v592
    %658 = vst.msk [vmem:[%s3 + $0x68] sm:$0xff] %vm644, %v593
    %659 = vst.msk [vmem:[%s3 + $0x70] sm:$0xff] %vm644, %v594
    %660 = vst.msk [vmem:[%s3 + $0x78] sm:$0xff] %vm644, %v595
    %661 = vst.msk [vmem:[%s3 + $0x80] sm:$0xff] %vm644, %v596
    %662 = vst.msk [vmem:[%s3 + $0x88] sm:$0xff] %vm644, %v597
    %663 = vst.msk [vmem:[%s3 + $0x90] sm:$0xff] %vm644, %v598
    %664 = vst.msk [vmem:[%s3 + $0x98] sm:$0xff] %vm644, %v599
    %665 = vst.msk [vmem:[%s3 + $0xa0] sm:$0xff] %vm644, %v600
    %666 = vst.msk [vmem:[%s3 + $0xa8] sm:$0xff] %vm644, %v601
    %667 = vst.msk [vmem:[%s3 + $0xb0] sm:$0xff] %vm644, %v602
    %668 = vst.msk [vmem:[%s3 + $0xb8] sm:$0xff] %vm644, %v603
    %669 = vst.msk [vmem:[%s3 + $0xc0] sm:$0xff] %vm644, %v604
    %670 = vst.msk [vmem:[%s3 + $0xc8] sm:$0xff] %vm644, %v605
    %671 = vst.msk [vmem:[%s3 + $0xd0] sm:$0xff] %vm644, %v606
    %672 = vst.msk [vmem:[%s3 + $0xd8] sm:$0xff] %vm644, %v607
    %673 = vst.msk [vmem:[%s3 + $0xe0] sm:$0xff] %vm644, %v608
    %674 = vst.msk [vmem:[%s3 + $0xe8] sm:$0xff] %vm644, %v609
    %675 = vst.msk [vmem:[%s3 + $0xf0] sm:$0xff] %vm644, %v610
    %676 = vst.msk [vmem:[%s3 + $0xf8] sm:$0xff] %vm644, %v611
    %677 = vst.msk [vmem:[%s3 + $0x100] sm:$0xff] %vm644, %v612
    %678 = vst.msk [vmem:[%s3 + $0x108] sm:$0xff] %vm644, %v613
    %679 = vst.msk [vmem:[%s3 + $0x110] sm:$0xff] %vm644, %v614
    %680 = vst.msk [vmem:[%s3 + $0x118] sm:$0xff] %vm644, %v615
    %681 = vst.msk [vmem:[%s3 + $0x120] sm:$0xff] %vm644, %v616
    %682 = vst.msk [vmem:[%s3 + $0x128] sm:$0xff] %vm644, %v617
    %683 = vst.msk [vmem:[%s3 + $0x130] sm:$0xff] %vm644, %v618
    %684 = vst.msk [vmem:[%s3 + $0x138] sm:$0xff] %vm644, %v619
    %685 = vst.msk [vmem:[%s3 + $0x140] sm:$0xff] %vm644, %v620
    %686 = vst.msk [vmem:[%s3 + $0x148] sm:$0xff] %vm644, %v621
    %687 = vst.msk [vmem:[%s3 + $0x150] sm:$0xff] %vm644, %v622
    %688 = vst.msk [vmem:[%s3 + $0x158] sm:$0xff] %vm644, %v623
    %689 = vst.msk [vmem:[%s3 + $0x160] sm:$0xff] %vm644, %v624
    %690 = vst.msk [vmem:[%s3 + $0x168] sm:$0xff] %vm644, %v625
    %691 = vst.msk [vmem:[%s3 + $0x170] sm:$0xff] %vm644, %v626
    %692 = vst.msk [vmem:[%s3 + $0x178] sm:$0xff] %vm644, %v627
    %693 = vst.msk [vmem:[%s3 + $0x180] sm:$0xff] %vm644, %v628
    %694 = vst.msk [vmem:[%s3 + $0x188] sm:$0xff] %vm644, %v629
    %695 = vst.msk [vmem:[%s3 + $0x190] sm:$0xff] %vm644, %v630
    %696 = vst.msk [vmem:[%s3 + $0x198] sm:$0xff] %vm644, %v631
    %697 = vst.msk [vmem:[%s3 + $0x1a0] sm:$0xff] %vm644, %v632
    %698 = vst.msk [vmem:[%s3 + $0x1a8] sm:$0xff] %vm644, %v633
    %699 = vst.msk [vmem:[%s3 + $0x1b0] sm:$0xff] %vm644, %v634
    %700 = vst.msk [vmem:[%s3 + $0x1b8] sm:$0xff] %vm644, %v635
    %701 = vst.msk [vmem:[%s3 + $0x1c0] sm:$0xff] %vm644, %v636
    %702 = vst.msk [vmem:[%s3 + $0x1c8] sm:$0xff] %vm644, %v637
    %703 = vst.msk [vmem:[%s3 + $0x1d0] sm:$0xff] %vm644, %v638
    %704 = vst.msk [vmem:[%s3 + $0x1d8] sm:$0xff] %vm644, %v639
    %705 = vst.msk [vmem:[%s3 + $0x1e0] sm:$0xff] %vm644, %v640
    %706 = vst.msk [vmem:[%s3 + $0x1e8] sm:$0xff] %vm644, %v641
    %707 = vst.msk [vmem:[%s3 + $0x1f0] sm:$0xff] %vm644, %v642
    %708 = vst.msk [vmem:[%s3 + $0x1f8] sm:$0xff] %vm644, %v643
    // Predicated region
    $region18: #{tpu_custom_call.1} parent=1 // pred_check
      _
    $region19: #{tpu_custom_call.1} parent=1 // pred_check_branch
      %710 = sbr.rel (0) target = $region21
    $region20: #{tpu_custom_call.1} parent=1 // pred_region
      _
    $region21: #{tpu_custom_call.1} parent=1 // pred_fallthru
      _
    // Predicated region
    $region22: #{tpu_custom_call.1} parent=1 // pred_check
      _
    $region23: #{tpu_custom_call.1} parent=1 // pred_check_branch
      %712 = sbr.rel (0) target = $region25
    $region24: #{tpu_custom_call.1} parent=1 // pred_region
      _
    $region25: #{tpu_custom_call.1} parent=1 // pred_fallthru
      _
    %713 = vsyncpa [#allocation3], 1

</llo_original>
